<compile_context>
chip_gen: v7x
topology: tpu7x:2x2x1
jax: 0.10.0
libtpu: 0.0.40
codegen_flags: <defaults>
</compile_context>

<pallas_src>
import jax
import jax.numpy as jnp
from jax import lax
from jax.experimental import pallas as pl
from jax.experimental.pallas import tpu as pltpu

LEAKY_SLOPE = 0.01      # torch.nn.LeakyReLU default negative_slope
HIDDEN = 100            # logical hidden size (as in the PyTorch module)
HIDDEN_PAD = 128        # lane-dense padded hidden size used inside the kernel


def _leaky_relu(h):
    return jnp.where(h > 0, h, LEAKY_SLOPE * h)


def mlp_kernel(x_ref, y_ref, w1_ref, b1_ref, w2_ref, b2_ref, w3_ref, b3_ref,
               o_ref):
    # Layer 1: fused concat(x, y) -> single bf16 (bb, X+Y) @ (X+Y, 128) MXU dot,
    # f32 accumulation.  The concat is a cheap in-VMEM lane shift/select.
    xy = jnp.concatenate([x_ref[...], y_ref[...]], axis=-1)           # bf16
    h = jnp.dot(xy, w1_ref[...], preferred_element_type=jnp.float32)  # f32
    h = _leaky_relu(h + b1_ref[...])                                  # f32 VPU

    # Layer 2: bf16 operands, f32 accumulation; element-wise math stays f32.
    h = jnp.dot(h.astype(jnp.bfloat16), w2_ref[...],
                preferred_element_type=jnp.float32)
    h = _leaky_relu(h + b2_ref[...])

    # Layer 3: lane-dense (1, bb) output row on the MXU:
    # w3row (1,128) contracted against h (bb,128) on the hidden dim -> (1, bb).
    out = lax.dot_general(
        w3_ref[...], h.astype(jnp.bfloat16),
        dimension_numbers=(((1,), (1,)), ((), ())),
        preferred_element_type=jnp.float32)                           # (1, bb)
    o_ref[...] = (out + b3_ref[0, 0]).astype(o_ref.dtype)


def _choose_block(batch, max_bb):
    """Pick (block_b, padded_batch).

    Prefers lane-dense (multiple-of-128) batch tiles that divide the batch
    (-> no host-side pad) and give >= 2 grid steps (v7x megacore sharding).
    Small / awkward batches fall back to a single full-batch tile (block ==
    array, no padding constraints)."""
    can_tile_clean = (batch % 128 == 0) and batch >= 256
    if batch <= max_bb and not can_tile_clean:
        return batch, batch
    pb = batch + (-batch) % 128          # usually == batch (no pad)
    upper = max(128, min(max_bb, pb // 2))
    bb = 128
    for m in range(upper // 128, 0, -1):
        cand = m * 128
        if pb % cand == 0:
            bb = cand
            break
    return bb, pb


def basic_dense_t_forward(x, y, prepped_params, *, max_block_b=2048):
    """Pallas equivalent of BasicDenseT.forward(x, y, permute=False)."""
    # TODO(synk): permute=True (torch.randperm row shuffle of x) and the unused
    # Dropout module are host-side / inactive in forward(); not implemented here.
    w1, b1, w2, b2, w3row, b3 = prepped_params
    batch, x_dim = x.shape
    y_dim = y.shape[1]
    in_dim = x_dim + y_dim
    hp = w2.shape[0]

    # bf16 activations into the kernel (half the HBM/VMEM traffic); all
    # element-wise math inside the kernel stays f32.
    x = x.astype(jnp.bfloat16)
    y = y.astype(jnp.bfloat16)

    bb, pb = _choose_block(batch, max_block_b)
    if pb != batch:  # fallback only; common path has no host-side pad copy
        x = jnp.pad(x, ((0, pb - batch), (0, 0)))
        y = jnp.pad(y, ((0, pb - batch), (0, 0)))
    grid = pb // bb

    out = pl.pallas_call(
        mlp_kernel,
        out_shape=jax.ShapeDtypeStruct((1, pb), jnp.float32),
        grid=(grid,),
        in_specs=[
            pl.BlockSpec((bb, x_dim), lambda i: (i, 0)),        # x  (batch-tiled)
            pl.BlockSpec((bb, y_dim), lambda i: (i, 0)),        # y  (batch-tiled)
            pl.BlockSpec((in_dim, hp), lambda i: (0, 0)),       # W1 (VMEM-resident)
            pl.BlockSpec((1, hp), lambda i: (0, 0)),            # b1 (f32)
            pl.BlockSpec((hp, hp), lambda i: (0, 0)),           # W2
            pl.BlockSpec((1, hp), lambda i: (0, 0)),            # b2 (f32)
            pl.BlockSpec((1, hp), lambda i: (0, 0)),            # W3 as a row
            pl.BlockSpec(memory_space=pltpu.MemorySpace.SMEM),  # b3 scalar
        ],
        out_specs=pl.BlockSpec((1, bb), lambda i: (0, i)),      # lane-dense row
        compiler_params=pltpu.CompilerParams(
            dimension_semantics=("parallel",),        # megacore-shard batch (v7x)
            vmem_limit_bytes=32 * 1024 * 1024,        # explicit headroom (v5e/v7x)
        ),
    )(x, y, w1, b1, w2, b2, w3row, b3)

    return out[0, :batch].reshape(batch, 1)


def init_params(key, x_dim, y_dim, hidden=HIDDEN):
    """Deterministic init mirroring torch.nn.Linear shapes.

    torch Linear stores W as (out, in); we store it pre-transposed (in, out).
    """
    k1, k2, k3, k4, k5, k6 = jax.random.split(key, 6)
    in1 = x_dim + y_dim

    def uinit(k, shape, fan_in):
        bound = 1.0 / jnp.sqrt(fan_in)
        return jax.random.uniform(k, shape, jnp.float32, -bound, bound)

    w1 = uinit(k1, (in1, hidden), in1)
    b1 = uinit(k2, (1, hidden), in1)
    w2 = uinit(k3, (hidden, hidden), hidden)
    b2 = uinit(k4, (1, hidden), hidden)
    w3 = uinit(k5, (hidden, 1), hidden)
    b3 = uinit(k6, (1, 1), hidden)
    return (w1, b1, w2, b2, w3, b3)


def prep_params(params, hidden_pad=HIDDEN_PAD):
    """One-time host-side prep: zero-pad the hidden dim to a lane-dense 128 and
    store MXU weight operands in bf16 (biases stay f32).  Zero padding leaves
    the math identical (padded hidden units are exactly 0 through every layer)."""
    w1, b1, w2, b2, w3, b3 = params
    hidden = w1.shape[1]
    ph = hidden_pad - hidden
    w1p = jnp.pad(w1, ((0, 0), (0, ph))).astype(jnp.bfloat16)       # (X+Y, 128)
    b1p = jnp.pad(b1, ((0, 0), (0, ph)))                            # (1, 128) f32
    w2p = jnp.pad(w2, ((0, ph), (0, ph))).astype(jnp.bfloat16)      # (128, 128)
    b2p = jnp.pad(b2, ((0, 0), (0, ph)))                            # (1, 128) f32
    w3row = jnp.pad(w3.T, ((0, 0), (0, ph))).astype(jnp.bfloat16)   # (1, 128)
    return (w1p, b1p, w2p, b2p, w3row, b3)


def reference_forward(x, y, params, mxu_dtype=jnp.float32):
    """Pure-JAX reference (exactly the PyTorch forward).  `mxu_dtype=bfloat16`
    mirrors the kernel's bf16-operand / f32-accumulate matmuls."""
    w1, b1, w2, b2, w3, b3 = params
    h = jnp.concatenate([x, y], axis=1)
    h = _leaky_relu(jnp.dot(h.astype(mxu_dtype), w1.astype(mxu_dtype),
                            preferred_element_type=jnp.float32) + b1)
    h = _leaky_relu(jnp.dot(h.astype(mxu_dtype), w2.astype(mxu_dtype),
                            preferred_element_type=jnp.float32) + b2)
    return jnp.dot(h.astype(mxu_dtype), w3.astype(mxu_dtype),
                   preferred_element_type=jnp.float32) + b3


if __name__ == "__main__":
    key = jax.random.PRNGKey(0)
    kx, ky, kp = jax.random.split(key, 3)

    batch, x_dim, y_dim = 256, 16, 16           # -> bb=128, 2 grid steps
    x = jax.random.normal(kx, (batch, x_dim), jnp.float32)
    y = jax.random.normal(ky, (batch, y_dim), jnp.float32)
    params = init_params(kp, x_dim, y_dim)
    prepped = prep_params(params)

    out = basic_dense_t_forward(x, y, prepped)
    out = jax.block_until_ready(out)
    assert out.shape == (batch, 1), out.shape

    # Tight check against a reference using the same bf16-operand matmuls.
    ref_bf16 = reference_forward(x, y, params, mxu_dtype=jnp.bfloat16)
    err_bf16 = float(jnp.max(jnp.abs(out - ref_bf16)))
    assert jnp.allclose(out, ref_bf16, atol=1e-3, rtol=1e-3), err_bf16

    # Loose sanity check against the full-f32 reference (bf16 operand rounding).
    ref_f32 = reference_forward(x, y, params, mxu_dtype=jnp.float32)
    err_f32 = float(jnp.max(jnp.abs(out - ref_f32)))
    assert jnp.allclose(out, ref_f32, atol=5e-2, rtol=5e-2), err_f32

    print("KERNEL_OK")
</pallas_src>

<mosaic_0001>
module attributes {stable_mosaic.version = 11 : i64} {
  func.func @mlp_kernel(%arg0: i32, %arg1: memref<128x16xbf16, #tpu.memory_space<vmem>>, %arg2: memref<128x16xbf16, #tpu.memory_space<vmem>>, %arg3: memref<32x128xbf16, #tpu.memory_space<vmem>>, %arg4: memref<1x128xf32, #tpu.memory_space<vmem>>, %arg5: memref<128x128xbf16, #tpu.memory_space<vmem>>, %arg6: memref<1x128xf32, #tpu.memory_space<vmem>>, %arg7: memref<1x128xbf16, #tpu.memory_space<vmem>>, %arg8: memref<1x1xf32, #tpu.memory_space<smem>>, %arg9: memref<1x128xf32, #tpu.memory_space<vmem>>) attributes {dimension_semantics = [#tpu.dimension_semantics<parallel>], iteration_bounds = array<i64: 2>, scalar_prefetch = 0 : i64, scratch_operands = 0 : i64, tpu.core_type = #tpu.core_type<tc>, window_params = [{transform_indices = @transform_0, window_bounds = array<i64: 128, 16>}, {transform_indices = @transform_1, window_bounds = array<i64: 128, 16>}, {pipeline_mode = #tpu.pipeline_mode<synchronous>, transform_indices = @transform_2, window_bounds = array<i64: 32, 128>}, {pipeline_mode = #tpu.pipeline_mode<synchronous>, transform_indices = @transform_3, window_bounds = array<i64: 1, 128>}, {pipeline_mode = #tpu.pipeline_mode<synchronous>, transform_indices = @transform_4, window_bounds = array<i64: 128, 128>}, {pipeline_mode = #tpu.pipeline_mode<synchronous>, transform_indices = @transform_5, window_bounds = array<i64: 1, 128>}, {pipeline_mode = #tpu.pipeline_mode<synchronous>, transform_indices = @transform_6, window_bounds = array<i64: 1, 128>}, {transform_indices = @transform_7, window_bounds = array<i64: 1, 1>}, {transform_indices = @transform_8, window_bounds = array<i64: 1, 128>}]} {
    %c0 = arith.constant 0 : index
    %c0_0 = arith.constant 0 : index
    %0 = vector.load %arg1[%c0, %c0_0] : memref<128x16xbf16, #tpu.memory_space<vmem>>, vector<128x16xbf16>
    %c0_1 = arith.constant 0 : index
    %c0_2 = arith.constant 0 : index
    %1 = vector.load %arg2[%c0_1, %c0_2] : memref<128x16xbf16, #tpu.memory_space<vmem>>, vector<128x16xbf16>
    %2 = tpu.concatenate %0, %1 in 1 : vector<128x16xbf16>, vector<128x16xbf16> -> vector<128x32xbf16>
    %c0_3 = arith.constant 0 : index
    %c0_4 = arith.constant 0 : index
    %3 = vector.load %arg3[%c0_3, %c0_4] : memref<32x128xbf16, #tpu.memory_space<vmem>>, vector<32x128xbf16>
    %cst = arith.constant dense<0.000000e+00> : vector<128x128xf32>
    %4 = tpu.matmul %2, %3, %cst {dimension_numbers = #tpu.dot_dimension_numbers<[1], [0], [0], [1], [0, 0, 1, 1], [], []>} : vector<128x32xbf16>, vector<32x128xbf16>, vector<128x128xf32> -> vector<128x128xf32>
    %c0_5 = arith.constant 0 : index
    %c0_6 = arith.constant 0 : index
    %5 = vector.load %arg4[%c0_5, %c0_6] : memref<1x128xf32, #tpu.memory_space<vmem>>, vector<1x128xf32>
    %6 = vector.broadcast %5 : vector<1x128xf32> to vector<128x128xf32>
    %7 = arith.addf %4, %6 : vector<128x128xf32>
    %cst_7 = arith.constant 0.000000e+00 : f32
    %8 = vector.broadcast %cst_7 : f32 to vector<128x128xf32>
    %9 = arith.cmpf ogt, %7, %8 : vector<128x128xf32>
    %cst_8 = arith.constant 0.00999999977 : f32
    %10 = vector.broadcast %cst_8 : f32 to vector<128x128xf32>
    %11 = arith.mulf %10, %7 : vector<128x128xf32>
    %12 = arith.select %9, %7, %11 : vector<128x128xi1>, vector<128x128xf32>
    %13 = arith.truncf %12 : vector<128x128xf32> to vector<128x128xbf16>
    %c0_9 = arith.constant 0 : index
    %c0_10 = arith.constant 0 : index
    %14 = vector.load %arg5[%c0_9, %c0_10] : memref<128x128xbf16, #tpu.memory_space<vmem>>, vector<128x128xbf16>
    %cst_11 = arith.constant dense<0.000000e+00> : vector<128x128xf32>
    %15 = tpu.matmul %13, %14, %cst_11 {dimension_numbers = #tpu.dot_dimension_numbers<[1], [0], [0], [1], [0, 0, 1, 1], [], []>} : vector<128x128xbf16>, vector<128x128xbf16>, vector<128x128xf32> -> vector<128x128xf32>
    %c0_12 = arith.constant 0 : index
    %c0_13 = arith.constant 0 : index
    %16 = vector.load %arg6[%c0_12, %c0_13] : memref<1x128xf32, #tpu.memory_space<vmem>>, vector<1x128xf32>
    %17 = vector.broadcast %16 : vector<1x128xf32> to vector<128x128xf32>
    %18 = arith.addf %15, %17 : vector<128x128xf32>
    %cst_14 = arith.constant 0.000000e+00 : f32
    %19 = vector.broadcast %cst_14 : f32 to vector<128x128xf32>
    %20 = arith.cmpf ogt, %18, %19 : vector<128x128xf32>
    %cst_15 = arith.constant 0.00999999977 : f32
    %21 = vector.broadcast %cst_15 : f32 to vector<128x128xf32>
    %22 = arith.mulf %21, %18 : vector<128x128xf32>
    %23 = arith.select %20, %18, %22 : vector<128x128xi1>, vector<128x128xf32>
    %c0_16 = arith.constant 0 : index
    %c0_17 = arith.constant 0 : index
    %24 = vector.load %arg7[%c0_16, %c0_17] : memref<1x128xbf16, #tpu.memory_space<vmem>>, vector<1x128xbf16>
    %25 = arith.truncf %23 : vector<128x128xf32> to vector<128x128xbf16>
    %cst_18 = arith.constant dense<0.000000e+00> : vector<1x128xf32>
    %26 = tpu.matmul %24, %25, %cst_18 {dimension_numbers = #tpu.dot_dimension_numbers<[1], [1], [0], [0], [0, 0, 1, 0], [], []>} : vector<1x128xbf16>, vector<128x128xbf16>, vector<1x128xf32> -> vector<1x128xf32>
    %c0_19 = arith.constant 0 : index
    %c0_20 = arith.constant 0 : index
    %27 = memref.load %arg8[%c0_19, %c0_20] : memref<1x1xf32, #tpu.memory_space<smem>>
    %28 = vector.broadcast %27 : f32 to vector<1x128xf32>
    %29 = arith.addf %26, %28 : vector<1x128xf32>
    %c0_21 = arith.constant 0 : index
    %c0_22 = arith.constant 0 : index
    %30 = vector.load %arg9[%c0_21, %c0_22] : memref<1x128xf32, #tpu.memory_space<vmem>>, vector<1x128xf32>
    tpu.vector_store %arg9[%c0_21, %c0_22], %29 {strides = array<i32>} : memref<1x128xf32, #tpu.memory_space<vmem>>, vector<1x128xf32>,
    return
  }
  func.func @transform_0(%arg0: i32) -> (i32, i32) {
    %c0_i32 = arith.constant 0 : i32
    %c0_i32_0 = arith.constant 0 : i32
    return %arg0, %c0_i32 : i32, i32
  }
  func.func @transform_1(%arg0: i32) -> (i32, i32) {
    %c0_i32 = arith.constant 0 : i32
    %c0_i32_0 = arith.constant 0 : i32
    return %arg0, %c0_i32 : i32, i32
  }
  func.func @transform_2(%arg0: i32) -> (i32, i32) {
    %c0_i32 = arith.constant 0 : i32
    %c0_i32_0 = arith.constant 0 : i32
    %c0_i32_1 = arith.constant 0 : i32
    return %c0_i32, %c0_i32_0 : i32, i32
  }
  func.func @transform_3(%arg0: i32) -> (i32, i32) {
    %c0_i32 = arith.constant 0 : i32
    %c0_i32_0 = arith.constant 0 : i32
    %c0_i32_1 = arith.constant 0 : i32
    return %c0_i32, %c0_i32_0 : i32, i32
  }
  func.func @transform_4(%arg0: i32) -> (i32, i32) {
    %c0_i32 = arith.constant 0 : i32
    %c0_i32_0 = arith.constant 0 : i32
    %c0_i32_1 = arith.constant 0 : i32
    return %c0_i32, %c0_i32_0 : i32, i32
  }
  func.func @transform_5(%arg0: i32) -> (i32, i32) {
    %c0_i32 = arith.constant 0 : i32
    %c0_i32_0 = arith.constant 0 : i32
    %c0_i32_1 = arith.constant 0 : i32
    return %c0_i32, %c0_i32_0 : i32, i32
  }
  func.func @transform_6(%arg0: i32) -> (i32, i32) {
    %c0_i32 = arith.constant 0 : i32
    %c0_i32_0 = arith.constant 0 : i32
    %c0_i32_1 = arith.constant 0 : i32
    return %c0_i32, %c0_i32_0 : i32, i32
  }
  func.func @transform_7(%arg0: i32) -> (i32, i32) {
    %c0_i32 = arith.constant 0 : i32
    %c0_i32_0 = arith.constant 0 : i32
    %c0_i32_1 = arith.constant 0 : i32
    return %c0_i32, %c0_i32_0 : i32, i32
  }
  func.func @transform_8(%arg0: i32) -> (i32, i32) {
    %c0_i32 = arith.constant 0 : i32
    %c0_i32_0 = arith.constant 0 : i32
    return %c0_i32, %arg0 : i32, i32
  }
}

</mosaic_0001>

<llo_original>
// kernel: tpu_custom_call.1
$region0: #{tpu_custom_call.1}
  #allocation0 [shape = 'u32[]', space=smem, size = 0x4, offset = 0x4, fixed_abs, tag = 'smem constant byte address 0x4 - core index']
  #allocation1 [shape = 'u32[144,128]{1,0:T(1,128)}', space=vmem, size = 0x12000, scoped, tag = 'internal scratch']
  #allocation2 [shape = 'f32[1,1]{1,0:T(1,128)S(6)}', space=smem, size = 0x200, scoped, tag = 'scoped memory for tpu_custom_call.1']
  %s0 = inlined_call_operand.vmem [shape: bf16[256,16], index: 0, kind: input, shape index: {}]
  %s1 = inlined_call_operand.vmem [shape: bf16[256,16], index: 1, kind: input, shape index: {}]
  %s2 = inlined_call_operand.vmem [shape: bf16[32,128], index: 2, kind: input, shape index: {}]
  %s3 = inlined_call_operand.vmem [shape: f32[1,128], index: 3, kind: input, shape index: {}]
  %s4 = inlined_call_operand.vmem [shape: bf16[128,128], index: 4, kind: input, shape index: {}]
  %s5 = inlined_call_operand.vmem [shape: f32[1,128], index: 5, kind: input, shape index: {}]
  %s6 = inlined_call_operand.vmem [shape: bf16[1,128], index: 6, kind: input, shape index: {}]
  %s7 = inlined_call_operand.<no memory space> [shape: f32[1,1], index: 7, kind: input, shape index: {}]
  %s8 = inlined_call_operand.hbm [shape: f32[1,256], index: 8, kind: output, shape index: {}]
  %s9 = sld [smem:[#allocation0]]
  $region65: #{tpu_custom_call.1} parent=0
    _
  %s11 = ssub.s32 1, %s9
  %s12 = scalar_select 0, %s11, %s9
  %13 = sst [smem:[#allocation2]] %s7
  $region1: #{tpu_custom_call.1} parent=0
    #allocation3 [shape = 'u8[1024]{0}', space=vmem, size = 0x400, scoped, tag = 'output window, operand 0']
    #allocation4 [shape = 's32[2]{0}', space=sflag, size = 0x8, scoped, tag = 'scoped memory for tpu_custom_call.1']
    %14 = vsyncpa [#allocation4], 0
    %s15 = scalar_lea.sflag [#allocation4], 1
    %16 = vsyncpa %s15, 0
    loop: start=0, step=1, limit=4
    $region2: #{tpu_custom_call.1} parent=1 // loop_pre_header
      _
    $region3: #{tpu_custom_call.1} parent=1 // loop_header
      %s18 = sphi 0, %s22
      %p19 = scmp.ge.s32.totalorder %s18, 4
      %s28 = sphi 0, %s30
      %s31 = sphi 0, %s28
      %s32 = sphi 0, %s31
      %s48 = sphi 0, %s32
      %s54 = sphi 0, %s56
      %s57 = sphi 0, %s54
      %s58 = sphi 0, %s57
      %s74 = sphi 0, %s58
      %s78 = sphi 0, %s78
      %s80 = sphi 0, %s78
      %s81 = sphi 0, %s80
      %s95 = sphi 0, %s81
      %s99 = sphi 0, %s99
      %s101 = sphi 0, %s99
      %s102 = sphi 0, %s101
      %s116 = sphi 0, %s102
      %s120 = sphi 0, %s120
      %s122 = sphi 0, %s120
      %s123 = sphi 0, %s122
      %s137 = sphi 0, %s123
      %s141 = sphi 0, %s141
      %s143 = sphi 0, %s141
      %s144 = sphi 0, %s143
      %s158 = sphi 0, %s144
      %s162 = sphi 0, %s162
      %s164 = sphi 0, %s162
      %s165 = sphi 0, %s164
      %s179 = sphi 0, %s165
      %s183 = sphi 0, %s183
      %s185 = sphi 0, %s183
      %s186 = sphi 0, %s185
      %s200 = sphi 0, %s186
      %s206 = sphi 0, %s208
      %s209 = sphi 0, %s206
      %s210 = sphi 0, %s209
      %s226 = sphi 0, %s210
    $region4: #{tpu_custom_call.1} parent=1 // loop_header_branch
      %21 = sbr.rel (%p19) target = $region8
    $region5: #{tpu_custom_call.1} parent=1 // loop_body
      %s23 = ssub.s32 %s18, 1
      %s24 = ssub.s32 %s18, 2
      %s25 = sadd.s32 %s18, 1
      %s26 = ssub.s32 %s18, %s25
      %p27 = scmp.eq.s32.totalorder %s26, 0
      %s29 = sadd.s32 %s28, 1
      %s30 = scalar_select %p27, %s28, %s29
      %p33 = pneg %p27
      %p34 = scmp.eq.s32.totalorder %s18, 1
      %p35 = por %p33, %p34
      %p36 = scmp.ne.s32.totalorder %s28, %s31
      %p37 = scmp.eq.s32.totalorder %s18, 0
      %p38 = por %p36, %p37
      %p39 = scmp.ne.s32.totalorder %s28, %s31
      %p40 = scmp.eq.s32.totalorder %s23, 1
      %p41 = por %p39, %p40
      %p42 = scmp.ne.s32.totalorder %s31, %s32
      %p43 = scmp.eq.s32.totalorder %s23, 0
      %p44 = por %p42, %p43
      %p45 = scmp.ne.s32.totalorder %s31, %s32
      %p46 = scmp.eq.s32.totalorder %s24, 1
      %p47 = por %p45, %p46
      %p49 = scmp.ne.s32.totalorder %s32, %s48
      %p50 = scmp.eq.s32.totalorder %s24, 0
      %p51 = por %p49, %p50
      %s52 = ssub.s32 %s18, %s25
      %p53 = scmp.eq.s32.totalorder %s52, 0
      %s55 = sadd.s32 %s54, 1
      %s56 = scalar_select %p53, %s54, %s55
      %p59 = pneg %p53
      %p60 = scmp.eq.s32.totalorder %s18, 1
      %p61 = por %p59, %p60
      %p62 = scmp.ne.s32.totalorder %s54, %s57
      %p63 = scmp.eq.s32.totalorder %s18, 0
      %p64 = por %p62, %p63
      %p65 = scmp.ne.s32.totalorder %s54, %s57
      %p66 = scmp.eq.s32.totalorder %s23, 1
      %p67 = por %p65, %p66
      %p68 = scmp.ne.s32.totalorder %s57, %s58
      %p69 = scmp.eq.s32.totalorder %s23, 0
      %p70 = por %p68, %p69
      %p71 = scmp.ne.s32.totalorder %s57, %s58
      %p72 = scmp.eq.s32.totalorder %s24, 1
      %p73 = por %p71, %p72
      %p75 = scmp.ne.s32.totalorder %s58, %s74
      %p76 = scmp.eq.s32.totalorder %s24, 0
      %p77 = por %p75, %p76
      %s79 = sadd.s32 %s78, 1
      %p82 = scmp.eq.s32.totalorder %s18, 1
      %p83 = scmp.ne.s32.totalorder %s78, %s80
      %p84 = scmp.eq.s32.totalorder %s18, 0
      %p85 = por %p83, %p84
      %p86 = scmp.ne.s32.totalorder %s78, %s80
      %p87 = scmp.eq.s32.totalorder %s23, 1
      %p88 = por %p86, %p87
      %p89 = scmp.ne.s32.totalorder %s80, %s81
      %p90 = scmp.eq.s32.totalorder %s23, 0
      %p91 = por %p89, %p90
      %p92 = scmp.ne.s32.totalorder %s80, %s81
      %p93 = scmp.eq.s32.totalorder %s24, 1
      %p94 = por %p92, %p93
      %p96 = scmp.ne.s32.totalorder %s81, %s95
      %p97 = scmp.eq.s32.totalorder %s24, 0
      %p98 = por %p96, %p97
      %s100 = sadd.s32 %s99, 1
      %p103 = scmp.eq.s32.totalorder %s18, 1
      %p104 = scmp.ne.s32.totalorder %s99, %s101
      %p105 = scmp.eq.s32.totalorder %s18, 0
      %p106 = por %p104, %p105
      %p107 = scmp.ne.s32.totalorder %s99, %s101
      %p108 = scmp.eq.s32.totalorder %s23, 1
      %p109 = por %p107, %p108
      %p110 = scmp.ne.s32.totalorder %s101, %s102
      %p111 = scmp.eq.s32.totalorder %s23, 0
      %p112 = por %p110, %p111
      %p113 = scmp.ne.s32.totalorder %s101, %s102
      %p114 = scmp.eq.s32.totalorder %s24, 1
      %p115 = por %p113, %p114
      %p117 = scmp.ne.s32.totalorder %s102, %s116
      %p118 = scmp.eq.s32.totalorder %s24, 0
      %p119 = por %p117, %p118
      %s121 = sadd.s32 %s120, 1
      %p124 = scmp.eq.s32.totalorder %s18, 1
      %p125 = scmp.ne.s32.totalorder %s120, %s122
      %p126 = scmp.eq.s32.totalorder %s18, 0
      %p127 = por %p125, %p126
      %p128 = scmp.ne.s32.totalorder %s120, %s122
      %p129 = scmp.eq.s32.totalorder %s23, 1
      %p130 = por %p128, %p129
      %p131 = scmp.ne.s32.totalorder %s122, %s123
      %p132 = scmp.eq.s32.totalorder %s23, 0
      %p133 = por %p131, %p132
      %p134 = scmp.ne.s32.totalorder %s122, %s123
      %p135 = scmp.eq.s32.totalorder %s24, 1
      %p136 = por %p134, %p135
      %p138 = scmp.ne.s32.totalorder %s123, %s137
      %p139 = scmp.eq.s32.totalorder %s24, 0
      %p140 = por %p138, %p139
      %s142 = sadd.s32 %s141, 1
      %p145 = scmp.eq.s32.totalorder %s18, 1
      %p146 = scmp.ne.s32.totalorder %s141, %s143
      %p147 = scmp.eq.s32.totalorder %s18, 0
      %p148 = por %p146, %p147
      %p149 = scmp.ne.s32.totalorder %s141, %s143
      %p150 = scmp.eq.s32.totalorder %s23, 1
      %p151 = por %p149, %p150
      %p152 = scmp.ne.s32.totalorder %s143, %s144
      %p153 = scmp.eq.s32.totalorder %s23, 0
      %p154 = por %p152, %p153
      %p155 = scmp.ne.s32.totalorder %s143, %s144
      %p156 = scmp.eq.s32.totalorder %s24, 1
      %p157 = por %p155, %p156
      %p159 = scmp.ne.s32.totalorder %s144, %s158
      %p160 = scmp.eq.s32.totalorder %s24, 0
      %p161 = por %p159, %p160
      %s163 = sadd.s32 %s162, 1
      %p166 = scmp.eq.s32.totalorder %s18, 1
      %p167 = scmp.ne.s32.totalorder %s162, %s164
      %p168 = scmp.eq.s32.totalorder %s18, 0
      %p169 = por %p167, %p168
      %p170 = scmp.ne.s32.totalorder %s162, %s164
      %p171 = scmp.eq.s32.totalorder %s23, 1
      %p172 = por %p170, %p171
      %p173 = scmp.ne.s32.totalorder %s164, %s165
      %p174 = scmp.eq.s32.totalorder %s23, 0
      %p175 = por %p173, %p174
      %p176 = scmp.ne.s32.totalorder %s164, %s165
      %p177 = scmp.eq.s32.totalorder %s24, 1
      %p178 = por %p176, %p177
      %p180 = scmp.ne.s32.totalorder %s165, %s179
      %p181 = scmp.eq.s32.totalorder %s24, 0
      %p182 = por %p180, %p181
      %s184 = sadd.s32 %s183, 1
      %p187 = scmp.eq.s32.totalorder %s18, 1
      %p188 = scmp.ne.s32.totalorder %s183, %s185
      %p189 = scmp.eq.s32.totalorder %s18, 0
      %p190 = por %p188, %p189
      %p191 = scmp.ne.s32.totalorder %s183, %s185
      %p192 = scmp.eq.s32.totalorder %s23, 1
      %p193 = por %p191, %p192
      %p194 = scmp.ne.s32.totalorder %s185, %s186
      %p195 = scmp.eq.s32.totalorder %s23, 0
      %p196 = por %p194, %p195
      %p197 = scmp.ne.s32.totalorder %s185, %s186
      %p198 = scmp.eq.s32.totalorder %s24, 1
      %p199 = por %p197, %p198
      %p201 = scmp.ne.s32.totalorder %s186, %s200
      %p202 = scmp.eq.s32.totalorder %s24, 0
      %p203 = por %p201, %p202
      %s204 = ssub.s32 %s18, %s25
      %p205 = scmp.eq.s32.totalorder %s204, 0
      %s207 = sadd.s32 %s206, 1
      %s208 = scalar_select %p205, %s206, %s207
      %p211 = pneg %p205
      %p212 = scmp.eq.s32.totalorder %s18, 1
      %p213 = por %p211, %p212
      %p214 = scmp.ne.s32.totalorder %s206, %s209
      %p215 = scmp.eq.s32.totalorder %s18, 0
      %p216 = por %p214, %p215
      %p217 = scmp.ne.s32.totalorder %s206, %s209
      %p218 = scmp.eq.s32.totalorder %s23, 1
      %p219 = por %p217, %p218
      %p220 = scmp.ne.s32.totalorder %s209, %s210
      %p221 = scmp.eq.s32.totalorder %s23, 0
      %p222 = por %p220, %p221
      %p223 = scmp.ne.s32.totalorder %s209, %s210
      %p224 = scmp.eq.s32.totalorder %s24, 1
      %p225 = por %p223, %p224
      %p227 = scmp.ne.s32.totalorder %s210, %s226
      %p228 = scmp.eq.s32.totalorder %s24, 0
      %p229 = por %p227, %p228
      %p230 = scmp.le.s32.totalorder 1, %s18
      %p231 = scmp.lt.s32.totalorder %s18, 3
      %p232 = pnand %p230, %p231
      %p233 = pneg %p232
      // Predicated region
      $region9: #{tpu_custom_call.1} parent=5 // pred_check
        _
      $region10: #{tpu_custom_call.1} parent=5 // pred_check_branch
        %235 = sbr.rel (%p232) target = $region12
      $region11: #{tpu_custom_call.1} parent=5 // pred_region
        %s236 = ssub.s32 %s18, 1
        // Predicated region
        $region13: #{tpu_custom_call.1} parent=11 // pred_check
          %p237 = pneg %p91
        $region14: #{tpu_custom_call.1} parent=11 // pred_check_branch
          %239 = sbr.rel (%p237) target = $region16
        $region15: #{tpu_custom_call.1} parent=11 // pred_region
          _
        $region16: #{tpu_custom_call.1} parent=11 // pred_fallthru
          _
        // Predicated region
        $region17: #{tpu_custom_call.1} parent=11 // pred_check
          %p240 = pneg %p112
        $region18: #{tpu_custom_call.1} parent=11 // pred_check_branch
          %242 = sbr.rel (%p240) target = $region20
        $region19: #{tpu_custom_call.1} parent=11 // pred_region
          _
        $region20: #{tpu_custom_call.1} parent=11 // pred_fallthru
          _
        // Predicated region
        $region21: #{tpu_custom_call.1} parent=11 // pred_check
          %p243 = pneg %p133
        $region22: #{tpu_custom_call.1} parent=11 // pred_check_branch
          %245 = sbr.rel (%p243) target = $region24
        $region23: #{tpu_custom_call.1} parent=11 // pred_region
          _
        $region24: #{tpu_custom_call.1} parent=11 // pred_fallthru
          _
        // Predicated region
        $region25: #{tpu_custom_call.1} parent=11 // pred_check
          %p246 = pneg %p154
        $region26: #{tpu_custom_call.1} parent=11 // pred_check_branch
          %248 = sbr.rel (%p246) target = $region28
        $region27: #{tpu_custom_call.1} parent=11 // pred_region
          _
        $region28: #{tpu_custom_call.1} parent=11 // pred_fallthru
          _
        // Predicated region
        $region29: #{tpu_custom_call.1} parent=11 // pred_check
          %p249 = pneg %p175
        $region30: #{tpu_custom_call.1} parent=11 // pred_check_branch
          %251 = sbr.rel (%p249) target = $region32
        $region31: #{tpu_custom_call.1} parent=11 // pred_region
          _
        $region32: #{tpu_custom_call.1} parent=11 // pred_fallthru
          _
        // Predicated region
        $region33: #{tpu_custom_call.1} parent=11 // pred_check
          %p252 = pneg %p196
        $region34: #{tpu_custom_call.1} parent=11 // pred_check_branch
          %254 = sbr.rel (%p252) target = $region36
        $region35: #{tpu_custom_call.1} parent=11 // pred_region
          _
        $region36: #{tpu_custom_call.1} parent=11 // pred_fallthru
          _
      $region12: #{tpu_custom_call.1} parent=5 // pred_fallthru
        _
      %p255 = scmp.lt.s32.totalorder %s18, 2
      // Predicated region
      $region37: #{tpu_custom_call.1} parent=5 // pred_check
        %p256 = pneg %p255
      $region38: #{tpu_custom_call.1} parent=5 // pred_check_branch
        %258 = sbr.rel (%p256) target = $region40
      $region39: #{tpu_custom_call.1} parent=5 // pred_region
        // Predicated region
        $region41: #{tpu_custom_call.1} parent=39 // pred_check
          %p259 = pneg %p38
        $region42: #{tpu_custom_call.1} parent=39 // pred_check_branch
          %261 = sbr.rel (%p259) target = $region44
        $region43: #{tpu_custom_call.1} parent=39 // pred_region
          %s262 = smul.u32 16, %s18
          %p263 = scmp.lt.s32.totalorder %s262, 31
          %s264 = scalar_select %p263, %s262, 31
          %s265 = smul.addr %s264, 4
          %s266 = scalar_lea.vmem %s0, %s265
          %s267 = smul.u32 16, %s18
        $region44: #{tpu_custom_call.1} parent=39 // pred_fallthru
          _
        // Predicated region
        $region45: #{tpu_custom_call.1} parent=39 // pred_check
          %p268 = pneg %p64
        $region46: #{tpu_custom_call.1} parent=39 // pred_check_branch
          %270 = sbr.rel (%p268) target = $region48
        $region47: #{tpu_custom_call.1} parent=39 // pred_region
          %s271 = smul.u32 16, %s18
          %p272 = scmp.lt.s32.totalorder %s271, 31
          %s273 = scalar_select %p272, %s271, 31
          %s274 = smul.addr %s273, 4
          %s275 = scalar_lea.vmem %s1, %s274
          %s276 = smul.u32 16, %s18
        $region48: #{tpu_custom_call.1} parent=39 // pred_fallthru
          _
      $region40: #{tpu_custom_call.1} parent=5 // pred_fallthru
        _
      %p277 = scmp.le.s32.totalorder 1, %s18
      %p278 = scmp.lt.s32.totalorder %s18, 3
      %p279 = pnand %p277, %p278
      %p280 = pneg %p279
      // Predicated region
      $region49: #{tpu_custom_call.1} parent=5 // pred_check
        _
      $region50: #{tpu_custom_call.1} parent=5 // pred_check_branch
        %282 = sbr.rel (%p279) target = $region52
      $region51: #{tpu_custom_call.1} parent=5 // pred_region
        %s283 = ssub.s32 %s18, 1
        %s284 = smul.u32 16, %s23
        %p285 = scmp.lt.s32.totalorder %s284, 31
        %s286 = scalar_select %p285, %s284, 31
        %s287 = smul.addr %s286, 4
        %s288 = scalar_lea.vmem %s0, %s287
        %p289 = pneg %p44
        %p290 = pneg %p41
        %s291 = smul.u32 16, %s23
        %p292 = scmp.lt.s32.totalorder %s291, 31
        %s293 = scalar_select %p292, %s291, 31
        %s294 = smul.addr %s293, 4
        %s295 = scalar_lea.vmem %s1, %s294
        %p296 = pneg %p70
        %p297 = pneg %p67
        %p298 = pneg %p91
        %p299 = pneg %p88
        %p300 = pneg %p112
        %p301 = pneg %p109
        %p302 = pneg %p133
        %p303 = pneg %p130
        %p304 = pneg %p154
        %p305 = pneg %p151
        %p306 = pneg %p175
        %p307 = pneg %p172
        %p308 = pneg %p196
        %p309 = pneg %p193
        %p310 = pneg %p222
        %p311 = pneg %p219
        %s312 = sand.u32 %s209, 1
        %s313 = scalar_lea.sflag [#allocation4], %s312
        %s314 = sand.u32 %s209, 1
        %s315 = scalar_lea.vmem [#allocation3], %s314
        %s316 = smul.u32 16, %s23
        %p317 = scmp.lt.s32.totalorder %s316, 31
        %s318 = scalar_select %p317, %s316, 31
        %s319 = smul.addr %s318, 4
        %s320 = scalar_lea.vmem %s0, %s319
        %s321 = smul.u32 16, %s23
        %s322 = smul.u32 16, %s23
        %p323 = scmp.lt.s32.totalorder %s322, 31
        %s324 = scalar_select %p323, %s322, 31
        %s325 = smul.addr %s324, 4
        %s326 = scalar_lea.vmem %s1, %s325
        %s327 = smul.u32 16, %s23
        %v329 = vld [vmem:[%s320] sm:$0xf]
        %v330 = vld [vmem:[%s320 + $0x4] sm:$0xf]
        %v331 = vld [vmem:[%s320 + $0x8] sm:$0xf]
        %v332 = vld [vmem:[%s320 + $0xc] sm:$0xf]
        %v333 = vld [vmem:[%s320 + $0x10] sm:$0xf]
        %v334 = vld [vmem:[%s320 + $0x14] sm:$0xf]
        %v335 = vld [vmem:[%s320 + $0x18] sm:$0xf]
        %v336 = vld [vmem:[%s320 + $0x1c] sm:$0xf]
        %v337 = vld [vmem:[%s320 + $0x20] sm:$0xf]
        %v338 = vld [vmem:[%s320 + $0x24] sm:$0xf]
        %v339 = vld [vmem:[%s320 + $0x28] sm:$0xf]
        %v340 = vld [vmem:[%s320 + $0x2c] sm:$0xf]
        %v341 = vld [vmem:[%s320 + $0x30] sm:$0xf]
        %v342 = vld [vmem:[%s320 + $0x34] sm:$0xf]
        %v343 = vld [vmem:[%s320 + $0x38] sm:$0xf]
        %v344 = vld [vmem:[%s320 + $0x3c] sm:$0xf]
        %v345 = vld [vmem:[%s326] sm:$0xf]
        %v346 = vld [vmem:[%s326 + $0x4] sm:$0xf]
        %v347 = vld [vmem:[%s326 + $0x8] sm:$0xf]
        %v348 = vld [vmem:[%s326 + $0xc] sm:$0xf]
        %v349 = vld [vmem:[%s326 + $0x10] sm:$0xf]
        %v350 = vld [vmem:[%s326 + $0x14] sm:$0xf]
        %v351 = vld [vmem:[%s326 + $0x18] sm:$0xf]
        %v352 = vld [vmem:[%s326 + $0x1c] sm:$0xf]
        %v353 = vld [vmem:[%s326 + $0x20] sm:$0xf]
        %v354 = vld [vmem:[%s326 + $0x24] sm:$0xf]
        %v355 = vld [vmem:[%s326 + $0x28] sm:$0xf]
        %v356 = vld [vmem:[%s326 + $0x2c] sm:$0xf]
        %v357 = vld [vmem:[%s326 + $0x30] sm:$0xf]
        %v358 = vld [vmem:[%s326 + $0x34] sm:$0xf]
        %v359 = vld [vmem:[%s326 + $0x38] sm:$0xf]
        %v360 = vld [vmem:[%s326 + $0x3c] sm:$0xf]
        %v377 = vunpack.c.l.b16 %v329
        %v378 = vunpack.c.l.b16 %v330
        %v379 = vunpack.c.l.b16 %v331
        %v380 = vunpack.c.l.b16 %v332
        %v381 = vunpack.c.l.b16 %v333
        %v382 = vunpack.c.l.b16 %v334
        %v383 = vunpack.c.l.b16 %v335
        %v384 = vunpack.c.l.b16 %v336
        %v385 = vunpack.c.l.b16 %v337
        %v386 = vunpack.c.l.b16 %v338
        %v387 = vunpack.c.l.b16 %v339
        %v388 = vunpack.c.l.b16 %v340
        %v389 = vunpack.c.l.b16 %v341
        %v390 = vunpack.c.l.b16 %v342
        %v391 = vunpack.c.l.b16 %v343
        %v392 = vunpack.c.l.b16 %v344
        %v393 = vpack.c.b16 %v378, %v377
        %v394 = vpack.c.b16 %v380, %v379
        %v395 = vpack.c.b16 %v382, %v381
        %v396 = vpack.c.b16 %v384, %v383
        %v397 = vpack.c.b16 %v386, %v385
        %v398 = vpack.c.b16 %v388, %v387
        %v399 = vpack.c.b16 %v390, %v389
        %v400 = vpack.c.b16 %v392, %v391
        %v417 = vunpack.c.l.b16 %v345
        %v418 = vunpack.c.l.b16 %v346
        %v419 = vunpack.c.l.b16 %v347
        %v420 = vunpack.c.l.b16 %v348
        %v421 = vunpack.c.l.b16 %v349
        %v422 = vunpack.c.l.b16 %v350
        %v423 = vunpack.c.l.b16 %v351
        %v424 = vunpack.c.l.b16 %v352
        %v425 = vunpack.c.l.b16 %v353
        %v426 = vunpack.c.l.b16 %v354
        %v427 = vunpack.c.l.b16 %v355
        %v428 = vunpack.c.l.b16 %v356
        %v429 = vunpack.c.l.b16 %v357
        %v430 = vunpack.c.l.b16 %v358
        %v431 = vunpack.c.l.b16 %v359
        %v432 = vunpack.c.l.b16 %v360
        %v433 = vpack.c.b16 %v418, %v417
        %v434 = vpack.c.b16 %v420, %v419
        %v435 = vpack.c.b16 %v422, %v421
        %v436 = vpack.c.b16 %v424, %v423
        %v437 = vpack.c.b16 %v426, %v425
        %v438 = vpack.c.b16 %v428, %v427
        %v439 = vpack.c.b16 %v430, %v429
        %v440 = vpack.c.b16 %v432, %v431
        %441 = vrot.lane.b32.xlu0 %v433, 16
        %v442 = vpop.permute.xlu0 %441
        %443 = vrot.lane.b32.xlu0 %v434, 16
        %v444 = vpop.permute.xlu0 %443
        %445 = vrot.lane.b32.xlu0 %v435, 16
        %v446 = vpop.permute.xlu0 %445
        %447 = vrot.lane.b32.xlu0 %v436, 16
        %v448 = vpop.permute.xlu0 %447
        %449 = vrot.lane.b32.xlu0 %v437, 16
        %v450 = vpop.permute.xlu0 %449
        %451 = vrot.lane.b32.xlu0 %v438, 16
        %v452 = vpop.permute.xlu0 %451
        %453 = vrot.lane.b32.xlu0 %v439, 16
        %v454 = vpop.permute.xlu0 %453
        %455 = vrot.lane.b32.xlu0 %v440, 16
        %v456 = vpop.permute.xlu0 %455
        %vm457 = vcmask 130048
        %v460 = vsel %vm457, %v393, %v442
        %v463 = vsel %vm457, %v394, %v444
        %v466 = vsel %vm457, %v395, %v446
        %v469 = vsel %vm457, %v396, %v448
        %v472 = vsel %vm457, %v397, %v450
        %v475 = vsel %vm457, %v398, %v452
        %v478 = vsel %vm457, %v399, %v454
        %v481 = vsel %vm457, %v400, %v456
        %v482 = vld [vmem:[%s2] sm:$0xf]
        %v483 = vld [vmem:[%s2 + $0x4] sm:$0xf]
        %v484 = vld [vmem:[%s2 + $0x8] sm:$0xf]
        %v485 = vld [vmem:[%s2 + $0xc] sm:$0xf]
        %v486 = vld [vmem:[%s3] sm:$0x1]
        %v488 = vlaneseq
        %v489 = vshrl.u32 %v488, 7
        %v490 = vsub.s32 0, %v489
        %v491 = vrot.slane %v486, %v490
        %v497 = vunpack.c.l.b16 %v482
        %v498 = vunpack.c.l.b16 %v483
        %v499 = vunpack.c.l.b16 %v484
        %v500 = vunpack.c.l.b16 %v485
        %v501 = vpack.c.b16 %v498, %v497
        %v502 = vpack.c.b16 %v500, %v499
        %vm505 = vcmask 261120
        %v506 = vsel %vm505, %v460, 0
        %v508 = vsel %vm505, %v463, 0
        %v510 = vsel %vm505, %v466, 0
        %v512 = vsel %vm505, %v469, 0
        %v514 = vsel %vm505, %v472, 0
        %v516 = vsel %vm505, %v475, 0
        %v518 = vsel %vm505, %v478, 0
        %v520 = vsel %vm505, %v481, 0
        %522 = vmatprep.subr.bf16.mxu0 0
        %523 = vmatpush1.bf16.msra.mxu0 %v501
        %524 = vmatprep.subr.bf16.mxu0 0
        %525 = vmatpush1.bf16.msra.mxu0 %v502
        %526 = vmatprep.subr.bf16.mxu0 0
        %527 = vmatpush1.bf16.msra.mxu0 0
        %528 = vmatprep.subr.bf16.mxu0 0
        %529 = vmatpush1.bf16.msra.mxu0 0
        %530 = vmatprep.subr.bf16.mxu0 0
        %531 = vmatpush1.bf16.msra.mxu0 0
        %532 = vmatprep.subr.bf16.mxu0 0
        %533 = vmatpush1.bf16.msra.mxu0 0
        %534 = vmatprep.subr.bf16.mxu0 0
        %535 = vmatpush1.bf16.msra.mxu0 0
        %536 = vmatprep.subr.bf16.mxu0 0
        %537 = vmatpush1.bf16.msra.mxu0 0
        %538 = vmatprep.subr.bf16.mxu0 0
        %539 = vmatpush1.bf16.msra.mxu0 0
        %540 = vmatprep.subr.bf16.mxu0 0
        %541 = vmatpush1.bf16.msra.mxu0 0
        %542 = vmatprep.subr.bf16.mxu0 0
        %543 = vmatpush1.bf16.msra.mxu0 0
        %544 = vmatprep.subr.bf16.mxu0 0
        %545 = vmatpush1.bf16.msra.mxu0 0
        %546 = vmatprep.subr.bf16.mxu0 0
        %547 = vmatpush1.bf16.msra.mxu0 0
        %548 = vmatprep.subr.bf16.mxu0 0
        %549 = vmatpush1.bf16.msra.mxu0 0
        %550 = vmatprep.subr.bf16.mxu0 0
        %551 = vmatpush1.bf16.msra.mxu0 0
        %552 = vmatprep.subr.bf16.mxu0 0
        %553 = vmatpush1.bf16.msra.mxu0 0
        %554 = vmatprep.mubr.bf16.mxu0 0
        %555 = vmatmul.mubr.bf16.gmra.mrb[0].mxu0 %v506
        %v556 = vpop.f32.mrb[0].mxu0
        %v557 = vadd.f32 %v491, %v556
        %v558 = vpop.f32.mrb[0].mxu0
        %v559 = vpop.f32.mrb[0].mxu0
        %v560 = vadd.f32 %v491, %v559
        %v561 = vpop.f32.mrb[0].mxu0
        %562 = vmatprep.mubr.bf16.mxu0 0
        %563 = vmatmul.mubr.bf16.gmra.mrb[0].mxu0 %v508
        %v564 = vpop.f32.mrb[0].mxu0
        %v565 = vadd.f32 %v491, %v564
        %v566 = vpop.f32.mrb[0].mxu0
        %v567 = vpop.f32.mrb[0].mxu0
        %v568 = vadd.f32 %v491, %v567
        %v569 = vpop.f32.mrb[0].mxu0
        %570 = vmatprep.mubr.bf16.mxu0 0
        %571 = vmatmul.mubr.bf16.gmra.mrb[0].mxu0 %v510
        %v572 = vpop.f32.mrb[0].mxu0
        %v573 = vadd.f32 %v491, %v572
        %v574 = vpop.f32.mrb[0].mxu0
        %v575 = vpop.f32.mrb[0].mxu0
        %v576 = vadd.f32 %v491, %v575
        %v577 = vpop.f32.mrb[0].mxu0
        %578 = vmatprep.mubr.bf16.mxu0 0
        %579 = vmatmul.mubr.bf16.gmra.mrb[0].mxu0 %v512
        %v580 = vpop.f32.mrb[0].mxu0
        %v581 = vadd.f32 %v491, %v580
        %v582 = vpop.f32.mrb[0].mxu0
        %v583 = vpop.f32.mrb[0].mxu0
        %v584 = vadd.f32 %v491, %v583
        %v585 = vpop.f32.mrb[0].mxu0
        %586 = vmatprep.mubr.bf16.mxu0 0
        %587 = vmatmul.mubr.bf16.gmra.mrb[0].mxu0 %v514
        %v588 = vpop.f32.mrb[0].mxu0
        %v589 = vadd.f32 %v491, %v588
        %v590 = vpop.f32.mrb[0].mxu0
        %v591 = vpop.f32.mrb[0].mxu0
        %v592 = vadd.f32 %v491, %v591
        %v593 = vpop.f32.mrb[0].mxu0
        %594 = vmatprep.mubr.bf16.mxu0 0
        %595 = vmatmul.mubr.bf16.gmra.mrb[0].mxu0 %v516
        %v596 = vpop.f32.mrb[0].mxu0
        %v597 = vadd.f32 %v491, %v596
        %v598 = vpop.f32.mrb[0].mxu0
        %v599 = vpop.f32.mrb[0].mxu0
        %v600 = vadd.f32 %v491, %v599
        %v601 = vpop.f32.mrb[0].mxu0
        %602 = vmatprep.mubr.bf16.mxu0 0
        %603 = vmatmul.mubr.bf16.gmra.mrb[0].mxu0 %v518
        %v604 = vpop.f32.mrb[0].mxu0
        %v605 = vadd.f32 %v491, %v604
        %v606 = vpop.f32.mrb[0].mxu0
        %v607 = vpop.f32.mrb[0].mxu0
        %v608 = vadd.f32 %v491, %v607
        %v609 = vpop.f32.mrb[0].mxu0
        %610 = vmatprep.mubr.bf16.mxu0 0
        %611 = vmatmul.mubr.bf16.gmra.mrb[0].mxu0 %v520
        %v612 = vpop.f32.mrb[0].mxu0
        %v613 = vadd.f32 %v491, %v612
        %v614 = vpop.f32.mrb[0].mxu0
        %v615 = vpop.f32.mrb[0].mxu0
        %v616 = vadd.f32 %v491, %v615
        %v617 = vpop.f32.mrb[0].mxu0
        %618 = vdwg.mxu0
        %vm619 = vcmp.gt.f32.partialorder %v557, 0.0
        %vm620 = vcmp.gt.f32.partialorder %v560, 0.0
        %vm621 = vcmp.gt.f32.partialorder %v565, 0.0
        %vm622 = vcmp.gt.f32.partialorder %v568, 0.0
        %vm623 = vcmp.gt.f32.partialorder %v573, 0.0
        %vm624 = vcmp.gt.f32.partialorder %v576, 0.0
        %vm625 = vcmp.gt.f32.partialorder %v581, 0.0
        %vm626 = vcmp.gt.f32.partialorder %v584, 0.0
        %vm627 = vcmp.gt.f32.partialorder %v589, 0.0
        %vm628 = vcmp.gt.f32.partialorder %v592, 0.0
        %vm629 = vcmp.gt.f32.partialorder %v597, 0.0
        %vm630 = vcmp.gt.f32.partialorder %v600, 0.0
        %vm631 = vcmp.gt.f32.partialorder %v605, 0.0
        %vm632 = vcmp.gt.f32.partialorder %v608, 0.0
        %vm633 = vcmp.gt.f32.partialorder %v613, 0.0
        %vm634 = vcmp.gt.f32.partialorder %v616, 0.0
        %v635 = vmul.f32 %v557, 0.01
        %v636 = vmul.f32 %v560, 0.01
        %v637 = vmul.f32 %v565, 0.01
        %v638 = vmul.f32 %v568, 0.01
        %v639 = vmul.f32 %v573, 0.01
        %v640 = vmul.f32 %v576, 0.01
        %v641 = vmul.f32 %v581, 0.01
        %v642 = vmul.f32 %v584, 0.01
        %v643 = vmul.f32 %v589, 0.01
        %v644 = vmul.f32 %v592, 0.01
        %v645 = vmul.f32 %v597, 0.01
        %v646 = vmul.f32 %v600, 0.01
        %v647 = vmul.f32 %v605, 0.01
        %v648 = vmul.f32 %v608, 0.01
        %v649 = vmul.f32 %v613, 0.01
        %v650 = vmul.f32 %v616, 0.01
        %v651 = vsel %vm619, %v557, %v635
        %v652 = vsel %vm620, %v560, %v636
        %v653 = vsel %vm621, %v565, %v637
        %v654 = vsel %vm622, %v568, %v638
        %v655 = vsel %vm623, %v573, %v639
        %v656 = vsel %vm624, %v576, %v640
        %v657 = vsel %vm625, %v581, %v641
        %v658 = vsel %vm626, %v584, %v642
        %v659 = vsel %vm627, %v589, %v643
        %v660 = vsel %vm628, %v592, %v644
        %v661 = vsel %vm629, %v597, %v645
        %v662 = vsel %vm630, %v600, %v646
        %v663 = vsel %vm631, %v605, %v647
        %v664 = vsel %vm632, %v608, %v648
        %v665 = vsel %vm633, %v613, %v649
        %v666 = vsel %vm634, %v616, %v650
        %v667 = vpack.c.bf16 %v652, %v651
        %v668 = vpack.c.bf16 %v654, %v653
        %v669 = vpack.c.bf16 %v656, %v655
        %v670 = vpack.c.bf16 %v658, %v657
        %v671 = vpack.c.bf16 %v660, %v659
        %v672 = vpack.c.bf16 %v662, %v661
        %v673 = vpack.c.bf16 %v664, %v663
        %v674 = vpack.c.bf16 %v666, %v665
        %v675 = vld [vmem:[%s4] sm:$0xf]
        %v676 = vld [vmem:[%s4 + $0x4] sm:$0xf]
        %v677 = vld [vmem:[%s4 + $0x8] sm:$0xf]
        %v678 = vld [vmem:[%s4 + $0xc] sm:$0xf]
        %v679 = vld [vmem:[%s4 + $0x10] sm:$0xf]
        %v680 = vld [vmem:[%s4 + $0x14] sm:$0xf]
        %v681 = vld [vmem:[%s4 + $0x18] sm:$0xf]
        %v682 = vld [vmem:[%s4 + $0x1c] sm:$0xf]
        %v683 = vld [vmem:[%s4 + $0x20] sm:$0xf]
        %v684 = vld [vmem:[%s4 + $0x24] sm:$0xf]
        %v685 = vld [vmem:[%s4 + $0x28] sm:$0xf]
        %v686 = vld [vmem:[%s4 + $0x2c] sm:$0xf]
        %v687 = vld [vmem:[%s4 + $0x30] sm:$0xf]
        %v688 = vld [vmem:[%s4 + $0x34] sm:$0xf]
        %v689 = vld [vmem:[%s4 + $0x38] sm:$0xf]
        %v690 = vld [vmem:[%s4 + $0x3c] sm:$0xf]
        %v691 = vld [vmem:[%s5] sm:$0x1]
        %v693 = vlaneseq
        %v694 = vshrl.u32 %v693, 7
        %v695 = vsub.s32 0, %v694
        %v696 = vrot.slane %v691, %v695
        %v714 = vunpack.c.l.b16 %v675
        %v715 = vunpack.c.l.b16 %v676
        %v716 = vunpack.c.l.b16 %v677
        %v717 = vunpack.c.l.b16 %v678
        %v718 = vunpack.c.l.b16 %v679
        %v719 = vunpack.c.l.b16 %v680
        %v720 = vunpack.c.l.b16 %v681
        %v721 = vunpack.c.l.b16 %v682
        %v722 = vunpack.c.l.b16 %v683
        %v723 = vunpack.c.l.b16 %v684
        %v724 = vunpack.c.l.b16 %v685
        %v725 = vunpack.c.l.b16 %v686
        %v726 = vunpack.c.l.b16 %v687
        %v727 = vunpack.c.l.b16 %v688
        %v728 = vunpack.c.l.b16 %v689
        %v729 = vunpack.c.l.b16 %v690
        %v730 = vpack.c.b16 %v715, %v714
        %v731 = vpack.c.b16 %v717, %v716
        %v732 = vpack.c.b16 %v719, %v718
        %v733 = vpack.c.b16 %v721, %v720
        %v734 = vpack.c.b16 %v723, %v722
        %v735 = vpack.c.b16 %v725, %v724
        %v736 = vpack.c.b16 %v727, %v726
        %v737 = vpack.c.b16 %v729, %v728
        %746 = vmatprep.subr.bf16.mxu0 0
        %747 = vmatpush1.bf16.msra.mxu0 %v730
        %748 = vmatprep.subr.bf16.mxu0 0
        %749 = vmatpush1.bf16.msra.mxu0 %v731
        %750 = vmatprep.subr.bf16.mxu0 0
        %751 = vmatpush1.bf16.msra.mxu0 %v732
        %752 = vmatprep.subr.bf16.mxu0 0
        %753 = vmatpush1.bf16.msra.mxu0 %v733
        %754 = vmatprep.subr.bf16.mxu0 0
        %755 = vmatpush1.bf16.msra.mxu0 %v734
        %756 = vmatprep.subr.bf16.mxu0 0
        %757 = vmatpush1.bf16.msra.mxu0 %v735
        %758 = vmatprep.subr.bf16.mxu0 0
        %759 = vmatpush1.bf16.msra.mxu0 %v736
        %760 = vmatprep.subr.bf16.mxu0 0
        %761 = vmatpush1.bf16.msra.mxu0 %v737
        %762 = vmatprep.subr.bf16.mxu0 0
        %763 = vmatpush1.bf16.msra.mxu0 0
        %764 = vmatprep.subr.bf16.mxu0 0
        %765 = vmatpush1.bf16.msra.mxu0 0
        %766 = vmatprep.subr.bf16.mxu0 0
        %767 = vmatpush1.bf16.msra.mxu0 0
        %768 = vmatprep.subr.bf16.mxu0 0
        %769 = vmatpush1.bf16.msra.mxu0 0
        %770 = vmatprep.subr.bf16.mxu0 0
        %771 = vmatpush1.bf16.msra.mxu0 0
        %772 = vmatprep.subr.bf16.mxu0 0
        %773 = vmatpush1.bf16.msra.mxu0 0
        %774 = vmatprep.subr.bf16.mxu0 0
        %775 = vmatpush1.bf16.msra.mxu0 0
        %776 = vmatprep.subr.bf16.mxu0 0
        %777 = vmatpush1.bf16.msra.mxu0 0
        %778 = vmatprep.mubr.bf16.mxu0 0
        %779 = vmatmul.mubr.bf16.gmra.mrb[0].mxu0 %v667
        %v780 = vpop.f32.mrb[0].mxu0
        %v781 = vadd.f32 %v696, %v780
        %v782 = vpop.f32.mrb[0].mxu0
        %v783 = vpop.f32.mrb[0].mxu0
        %v784 = vadd.f32 %v696, %v783
        %v785 = vpop.f32.mrb[0].mxu0
        %786 = vmatprep.mubr.bf16.mxu0 0
        %787 = vmatmul.mubr.bf16.gmra.mrb[0].mxu0 %v668
        %v788 = vpop.f32.mrb[0].mxu0
        %v789 = vadd.f32 %v696, %v788
        %v790 = vpop.f32.mrb[0].mxu0
        %v791 = vpop.f32.mrb[0].mxu0
        %v792 = vadd.f32 %v696, %v791
        %v793 = vpop.f32.mrb[0].mxu0
        %794 = vmatprep.mubr.bf16.mxu0 0
        %795 = vmatmul.mubr.bf16.gmra.mrb[0].mxu0 %v669
        %v796 = vpop.f32.mrb[0].mxu0
        %v797 = vadd.f32 %v696, %v796
        %v798 = vpop.f32.mrb[0].mxu0
        %v799 = vpop.f32.mrb[0].mxu0
        %v800 = vadd.f32 %v696, %v799
        %v801 = vpop.f32.mrb[0].mxu0
        %802 = vmatprep.mubr.bf16.mxu0 0
        %803 = vmatmul.mubr.bf16.gmra.mrb[0].mxu0 %v670
        %v804 = vpop.f32.mrb[0].mxu0
        %v805 = vadd.f32 %v696, %v804
        %v806 = vpop.f32.mrb[0].mxu0
        %v807 = vpop.f32.mrb[0].mxu0
        %v808 = vadd.f32 %v696, %v807
        %v809 = vpop.f32.mrb[0].mxu0
        %810 = vmatprep.mubr.bf16.mxu0 0
        %811 = vmatmul.mubr.bf16.gmra.mrb[0].mxu0 %v671
        %v812 = vpop.f32.mrb[0].mxu0
        %v813 = vadd.f32 %v696, %v812
        %v814 = vpop.f32.mrb[0].mxu0
        %v815 = vpop.f32.mrb[0].mxu0
        %v816 = vadd.f32 %v696, %v815
        %v817 = vpop.f32.mrb[0].mxu0
        %818 = vmatprep.mubr.bf16.mxu0 0
        %819 = vmatmul.mubr.bf16.gmra.mrb[0].mxu0 %v672
        %v820 = vpop.f32.mrb[0].mxu0
        %v821 = vadd.f32 %v696, %v820
        %v822 = vpop.f32.mrb[0].mxu0
        %v823 = vpop.f32.mrb[0].mxu0
        %v824 = vadd.f32 %v696, %v823
        %v825 = vpop.f32.mrb[0].mxu0
        %826 = vmatprep.mubr.bf16.mxu0 0
        %827 = vmatmul.mubr.bf16.gmra.mrb[0].mxu0 %v673
        %v828 = vpop.f32.mrb[0].mxu0
        %v829 = vadd.f32 %v696, %v828
        %v830 = vpop.f32.mrb[0].mxu0
        %v831 = vpop.f32.mrb[0].mxu0
        %v832 = vadd.f32 %v696, %v831
        %v833 = vpop.f32.mrb[0].mxu0
        %834 = vmatprep.mubr.bf16.mxu0 0
        %835 = vmatmul.mubr.bf16.gmra.mrb[0].mxu0 %v674
        %v836 = vpop.f32.mrb[0].mxu0
        %v837 = vadd.f32 %v696, %v836
        %v838 = vpop.f32.mrb[0].mxu0
        %v839 = vpop.f32.mrb[0].mxu0
        %v840 = vadd.f32 %v696, %v839
        %v841 = vpop.f32.mrb[0].mxu0
        %842 = vdwg.mxu0
        %vm843 = vcmp.gt.f32.partialorder %v781, 0.0
        %vm844 = vcmp.gt.f32.partialorder %v784, 0.0
        %vm845 = vcmp.gt.f32.partialorder %v789, 0.0
        %vm846 = vcmp.gt.f32.partialorder %v792, 0.0
        %vm847 = vcmp.gt.f32.partialorder %v797, 0.0
        %vm848 = vcmp.gt.f32.partialorder %v800, 0.0
        %vm849 = vcmp.gt.f32.partialorder %v805, 0.0
        %vm850 = vcmp.gt.f32.partialorder %v808, 0.0
        %vm851 = vcmp.gt.f32.partialorder %v813, 0.0
        %vm852 = vcmp.gt.f32.partialorder %v816, 0.0
        %vm853 = vcmp.gt.f32.partialorder %v821, 0.0
        %vm854 = vcmp.gt.f32.partialorder %v824, 0.0
        %vm855 = vcmp.gt.f32.partialorder %v829, 0.0
        %vm856 = vcmp.gt.f32.partialorder %v832, 0.0
        %vm857 = vcmp.gt.f32.partialorder %v837, 0.0
        %vm858 = vcmp.gt.f32.partialorder %v840, 0.0
        %v859 = vmul.f32 %v781, 0.01
        %v860 = vmul.f32 %v784, 0.01
        %v861 = vmul.f32 %v789, 0.01
        %v862 = vmul.f32 %v792, 0.01
        %v863 = vmul.f32 %v797, 0.01
        %v864 = vmul.f32 %v800, 0.01
        %v865 = vmul.f32 %v805, 0.01
        %v866 = vmul.f32 %v808, 0.01
        %v867 = vmul.f32 %v813, 0.01
        %v868 = vmul.f32 %v816, 0.01
        %v869 = vmul.f32 %v821, 0.01
        %v870 = vmul.f32 %v824, 0.01
        %v871 = vmul.f32 %v829, 0.01
        %v872 = vmul.f32 %v832, 0.01
        %v873 = vmul.f32 %v837, 0.01
        %v874 = vmul.f32 %v840, 0.01
        %v875 = vsel %vm843, %v781, %v859
        %v876 = vsel %vm844, %v784, %v860
        %v877 = vsel %vm845, %v789, %v861
        %v878 = vsel %vm846, %v792, %v862
        %v879 = vsel %vm847, %v797, %v863
        %v880 = vsel %vm848, %v800, %v864
        %v881 = vsel %vm849, %v805, %v865
        %v882 = vsel %vm850, %v808, %v866
        %v883 = vsel %vm851, %v813, %v867
        %v884 = vsel %vm852, %v816, %v868
        %v885 = vsel %vm853, %v821, %v869
        %v886 = vsel %vm854, %v824, %v870
        %v887 = vsel %vm855, %v829, %v871
        %v888 = vsel %vm856, %v832, %v872
        %v889 = vsel %vm857, %v837, %v873
        %v890 = vsel %vm858, %v840, %v874
        %v891 = vld [vmem:[%s6] sm:$0x1]
        %v892 = vpack.c.bf16 %v876, %v875
        %v893 = vpack.c.bf16 %v878, %v877
        %v894 = vpack.c.bf16 %v880, %v879
        %v895 = vpack.c.bf16 %v882, %v881
        %v896 = vpack.c.bf16 %v884, %v883
        %v897 = vpack.c.bf16 %v886, %v885
        %v898 = vpack.c.bf16 %v888, %v887
        %v899 = vpack.c.bf16 %v890, %v889
        %s900 = sld [smem:[#allocation2]]
        %v901 = vstv %s900
        %902 = vmatprep.subr.bf16.mxu0 0
        %903 = vmatpush1.bf16.xpose.msra.mxu0 %v892
        %904 = vmatprep.subr.bf16.mxu0 0
        %905 = vmatpush1.bf16.xpose.msra.mxu0 %v893
        %906 = vmatprep.subr.bf16.mxu0 0
        %907 = vmatpush1.bf16.xpose.msra.mxu0 %v894
        %908 = vmatprep.subr.bf16.mxu0 0
        %909 = vmatpush1.bf16.xpose.msra.mxu0 %v895
        %910 = vmatprep.subr.bf16.mxu0 0
        %911 = vmatpush1.bf16.xpose.msra.mxu0 %v896
        %912 = vmatprep.subr.bf16.mxu0 0
        %913 = vmatpush1.bf16.xpose.msra.mxu0 %v897
        %914 = vmatprep.subr.bf16.mxu0 0
        %915 = vmatpush1.bf16.xpose.msra.mxu0 %v898
        %916 = vmatprep.subr.bf16.mxu0 0
        %917 = vmatpush1.bf16.xpose.msra.mxu0 %v899
        %918 = vmatprep.subr.bf16.mxu0 0
        %919 = vmatpush1.bf16.xpose.msra.mxu0 0
        %920 = vmatprep.subr.bf16.mxu0 0
        %921 = vmatpush1.bf16.xpose.msra.mxu0 0
        %922 = vmatprep.subr.bf16.mxu0 0
        %923 = vmatpush1.bf16.xpose.msra.mxu0 0
        %924 = vmatprep.subr.bf16.mxu0 0
        %925 = vmatpush1.bf16.xpose.msra.mxu0 0
        %926 = vmatprep.subr.bf16.mxu0 0
        %927 = vmatpush1.bf16.xpose.msra.mxu0 0
        %928 = vmatprep.subr.bf16.mxu0 0
        %929 = vmatpush1.bf16.xpose.msra.mxu0 0
        %930 = vmatprep.subr.bf16.mxu0 0
        %931 = vmatpush1.bf16.xpose.msra.mxu0 0
        %932 = vmatprep.subr.bf16.mxu0 0
        %933 = vmatpush1.bf16.xpose.msra.mxu0 0
        %934 = vmatprep.mubr.bf16.mxu0 0
        %935 = vmatmul.mubr.bf16.gmra.mrb[0].mxu0 %v891
        %v936 = vpop.f32.mrb[0].mxu0
        %v937 = vadd.f32 %v901, %v936
        %v938 = vpop.f32.mrb[0].mxu0
        %v939 = vpop.f32.mrb[0].mxu0
        %v940 = vpop.f32.mrb[0].mxu0
        %941 = vdwg.mxu0
        %942 = vst [vmem:[%s315] sm:$0x1] %v937
        %s943 = sand.u32 %s209, 1
        %s944 = scalar_lea.sflag [#allocation4], %s943
        %s945 = sand.u32 %s209, 1
        %s946 = scalar_lea.vmem [#allocation3], %s945
        // Predicated region
        $region53: #{tpu_custom_call.1} parent=51 // pred_check
          %p947 = pneg %p219
        $region54: #{tpu_custom_call.1} parent=51 // pred_check_branch
          %949 = sbr.rel (%p947) target = $region56
        $region55: #{tpu_custom_call.1} parent=51 // pred_region
          %s951 = ssub.s32 16, 16
          %952 = vsyncadd %s944, %s951
          %s953 = smul.addr %s23, 16
          %s954 = scalar_lea.hbm %s8, %s953
          %s956 = sshll.u32 %s946, 4
          %s957 = int_to_ptr.vmem [resolvable:$true] %s956
          %959 = dma.vmem_to_hbm [thread:$0]  %s957, 16, %s954, %s944
        $region56: #{tpu_custom_call.1} parent=51 // pred_fallthru
          _
      $region52: #{tpu_custom_call.1} parent=5 // pred_fallthru
        _
      %p960 = scmp.le.s32.totalorder 2, %s18
      // Predicated region
      $region57: #{tpu_custom_call.1} parent=5 // pred_check
        %p961 = pneg %p960
      $region58: #{tpu_custom_call.1} parent=5 // pred_check_branch
        %963 = sbr.rel (%p961) target = $region60
      $region59: #{tpu_custom_call.1} parent=5 // pred_region
        %s964 = ssub.s32 %s18, 2
        // Predicated region
        $region61: #{tpu_custom_call.1} parent=59 // pred_check
          %p965 = pneg %p225
        $region62: #{tpu_custom_call.1} parent=59 // pred_check_branch
          %967 = sbr.rel (%p965) target = $region64
        $region63: #{tpu_custom_call.1} parent=59 // pred_region
          %s968 = sand.u32 %s210, 1
          %s969 = scalar_lea.sflag [#allocation4], %s968
          %s970 = sand.u32 %s210, 1
          %s971 = scalar_lea.vmem [#allocation3], %s970
          %972 = dma.done %s969, 16
        $region64: #{tpu_custom_call.1} parent=59 // pred_fallthru
          _
      $region60: #{tpu_custom_call.1} parent=5 // pred_fallthru
        _
    $region6: #{tpu_custom_call.1} parent=1 // loop_footer
      %s22 = sadd.s32 1, %s18
    $region7: #{tpu_custom_call.1} parent=1 // loop_footer_branch
      %17 = sbr.rel target = $region3
    $region8: #{tpu_custom_call.1} parent=1 // loop_exit
      _
    %973 = vsyncpa [#allocation4], 1
    %s974 = scalar_lea.sflag [#allocation4], 1
    %975 = vsyncpa %s974, 1

</llo_original>
